<compile_context>
chip_gen: v6e
topology: v6e:2x2x1
jax: 0.10.0
libtpu: 0.0.40
codegen_flags: <defaults>
</compile_context>

<pallas_src>
import jax
import jax.numpy as jnp
from jax.experimental import pallas as pl
from jax.experimental.pallas import tpu as pltpu

SMOOTH_W = 0.02
MIN_DEPTH = 0.0


def _make_depth_sums_kernel(n_scales, tile_h, multi_tile):
    """Kernel computing per-row-tile partial sums into a flat SMEM output.

    Output layout (SMEM, shape (n_tiles * ncol,), ncol = 1 + 3*n_scales):
      [t*ncol + 0]        = sum(mask)                          (valid count)
      [t*ncol + 1 + 3k]   = sum( mask * |gt - dt_k| )
      [t*ncol + 2 + 3k]   = sum( (1-vx) * |dt_k[:, :, 1:] - dt_k[:, :, :-1]| )
      [t*ncol + 3 + 3k]   = sum( (1-vy) * |dt_k[:, 1:, :] - dt_k[:, :-1, :]| )
                            (incl. the pair straddling the previous row tile)
    """
    ncol = 1 + 3 * n_scales

    def kernel(gt_ref, *args):
        dt_refs = args[:n_scales]
        out_ref = args[n_scales]                               # SMEM flat
        prev_ref = args[n_scales + 1] if multi_tile else None  # VMEM carry

        t = pl.program_id(0)
        base = t * ncol

        if multi_tile:
            @pl.when(t == 0)
            def _init_carry():
                prev_ref[...] = jnp.zeros_like(prev_ref)

        gt = gt_ref[...].astype(jnp.float32)                   # (B, TILE_H, W)
        mask = (gt > MIN_DEPTH).astype(jnp.float32)

        # Valid-pixel count: identical for every scale -> once per tile.
        out_ref[base + 0] = jnp.sum(mask)

        # Shifted-mask products shared by every scale.
        one_m_vx = 1.0 - mask[:, :, 1:] * mask[:, :, :-1]      # (B, TILE_H, W-1)
        one_m_vy = 1.0 - mask[:, 1:, :] * mask[:, :-1, :]      # (B, TILE_H-1, W)

        if multi_tile:
            # Boundary pair: first row of this tile vs carried last row of the
            # previous tile (gated off on the first tile).
            bd_one_m_v = 1.0 - mask[:, 0, :] * prev_ref[n_scales]
            is_not_first = (t > 0).astype(jnp.float32)

        for k, dt_ref in enumerate(dt_refs):
            dt = dt_ref[...].astype(jnp.float32)               # (B, TILE_H, W)

            # Masked L1 depth term.
            out_ref[base + 1 + 3 * k] = jnp.sum(jnp.abs(gt - dt) * mask)

            # Horizontal smoothness (entirely inside the tile).
            gx = dt[:, :, 1:] - dt[:, :, :-1]
            out_ref[base + 2 + 3 * k] = jnp.sum(one_m_vx * jnp.abs(gx))

            # Vertical smoothness: within-tile pairs (+ cross-tile boundary).
            gy = dt[:, 1:, :] - dt[:, :-1, :]
            gy_sum = jnp.sum(one_m_vy * jnp.abs(gy))
            if multi_tile:
                bd = jnp.sum(bd_one_m_v * jnp.abs(dt[:, 0, :] - prev_ref[k]))
                gy_sum = gy_sum + is_not_first * bd
                prev_ref[k] = dt[:, tile_h - 1, :]             # carry last row
            out_ref[base + 3 + 3 * k] = gy_sum

        if multi_tile:
            prev_ref[n_scales] = mask[:, tile_h - 1, :]

    return kernel


def _pick_tile_h(h, b, w, n_scales, itemsize, min_itemsize,
                 vmem_budget_bytes=20 * 1024 * 1024):
    """Largest row-tile height that divides H, respects the sublane tiling rule
    for the narrowest input dtype, and keeps the double-buffered working set of
    all n_scales+1 inputs under the VMEM budget (fits the default scoped limits
    on v5e/v6e/v7x)."""
    sublane = 8 * max(1, 4 // max(min_itemsize, 1))   # 8 (f32), 16 (bf16), 32 (i8)
    per_row_bytes = 2 * (n_scales + 1) * b * w * itemsize      # x2: double buffer
    max_th = int(max(sublane, vmem_budget_bytes // max(per_row_bytes, 1)))
    max_th = min(max_th, 1024, h)
    for th in range(max_th, 0, -1):
        if h % th == 0 and (th % sublane == 0 or th == h):
            return th
    return h


def depth_loss(depth_gt_nchw, depths_dt, smooth_w=SMOOTH_W, tile_h=None):
    """Pallas equivalent of DepthLoss.forward({'depth': gt}, {'depths': dts})."""
    depth_gt = jnp.squeeze(depth_gt_nchw, axis=1)              # (B, H, W)
    b, h, w = depth_gt.shape
    n = len(depths_dt)
    # TODO(synk): pyramid scales with differing resolutions would need their
    # own grids (or wrapper-side resampling); this assumes a shared (B, H, W).
    for d in depths_dt:
        assert d.shape == (b, h, w), (d.shape, (b, h, w))

    itemsizes = [depth_gt.dtype.itemsize] + [d.dtype.itemsize for d in depths_dt]
    if tile_h is None:
        tile_h = _pick_tile_h(h, b, w, n, max(itemsizes), min(itemsizes))
    assert h % tile_h == 0, (h, tile_h)
    n_tiles = h // tile_h
    multi_tile = n_tiles > 1
    ncol = 1 + 3 * n

    def row_block():
        return pl.BlockSpec((b, tile_h, w), lambda t: (0, t, 0))

    scratch = [pltpu.VMEM((n + 1, b, w), jnp.float32)] if multi_tile else []

    n_elems = b * h * w
    cost = pl.CostEstimate(
        flops=n_elems * (2 + 8 * n),
        transcendentals=0,
        bytes_accessed=sum(n_elems * it for it in itemsizes) + n_tiles * ncol * 4,
    )

    partials = pl.pallas_call(
        _make_depth_sums_kernel(n, tile_h, multi_tile),
        out_shape=jax.ShapeDtypeStruct((n_tiles * ncol,), jnp.float32),
        grid_spec=pltpu.PrefetchScalarGridSpec(
            num_scalar_prefetch=0,
            grid=(n_tiles,),
            in_specs=[row_block() for _ in range(n + 1)],      # gt + N predictions
            out_specs=pl.BlockSpec(memory_space=pltpu.MemorySpace.SMEM),
            scratch_shapes=scratch,
        ),
        compiler_params=pltpu.CompilerParams(
            # Row-carry for the vertical gradient requires sequential tiles.
            dimension_semantics=("arbitrary",),
            vmem_limit_bytes=32 * 1024 * 1024,
        ),
        cost_estimate=cost,
    )(depth_gt, *depths_dt)

    partials = partials.reshape(n_tiles, ncol)
    count = jnp.sum(partials[:, 0])
    sum_abs = jnp.sum(partials[:, 1::3], axis=0)               # (N,)
    sum_gx = jnp.sum(partials[:, 2::3], axis=0)
    sum_gy = jnp.sum(partials[:, 3::3], axis=0)

    # NOTE: like the PyTorch reference, this yields inf/nan if gt has no valid
    # (> MIN_DEPTH) pixel at all.
    s = 1.0 / (count / float(b * h * w) + 1e-8)
    per_scale = s * sum_abs / count
    if smooth_w != 0:
        per_scale = per_scale + smooth_w * (
            sum_gx / float(b * h * (w - 1)) + sum_gy / float(b * (h - 1) * w))

    weights = 0.5 ** (n - 1 - jnp.arange(n, dtype=jnp.float32))
    total = jnp.sum(weights * per_scale)
    # TODO(synk): PyTorch wraps total.item() in an ACCValue metric object; here
    # we just return the scalar loss plus a plain dict.
    return total, {"loss": total}


def _reference_depth_loss(depth_gt_nchw, depths_dt, smooth_w=SMOOTH_W):
    """Pure-jnp transcription of the PyTorch module for verification."""
    depth_gt = jnp.squeeze(depth_gt_nchw, axis=1).astype(jnp.float32)
    valid = (depth_gt > MIN_DEPTH).astype(jnp.float32)
    s = 1.0 / (jnp.mean(valid) + 1e-8)
    total = 0.0
    n = len(depths_dt)
    for i, dt in enumerate(depths_dt):
        dt = dt.astype(jnp.float32)
        loss = 0.0
        if smooth_w != 0:
            gx = dt[:, :, 1:] - dt[:, :, :-1]
            gy = dt[:, 1:, :] - dt[:, :-1, :]
            vx = valid[:, :, 1:] * valid[:, :, :-1]
            vy = valid[:, 1:, :] * valid[:, :-1, :]
            loss += smooth_w * (jnp.mean((1 - vx) * jnp.abs(gx))
                                + jnp.mean((1 - vy) * jnp.abs(gy)))
        loss_depth = s * (jnp.sum(jnp.abs(depth_gt - dt) * valid) / jnp.sum(valid))
        loss += loss_depth
        total += (0.5 ** (n - i - 1)) * loss
    return total


if __name__ == "__main__":
    key = jax.random.PRNGKey(0)
    B, H, W, N_SCALES = 2, 16, 16, 3

    k_gt, k_dt = jax.random.split(key)
    # gt depth in NCHW with some <=0 (invalid) pixels, like a real depth map.
    gt_raw = jax.random.uniform(k_gt, (B, 1, H, W), dtype=jnp.float32,
                                minval=-1.0, maxval=5.0)
    depth_gt_nchw = jnp.maximum(gt_raw, 0.0)

    dt_keys = jax.random.split(k_dt, N_SCALES)
    depths_dt = [jax.random.uniform(k, (B, H, W), dtype=jnp.float32,
                                    minval=0.0, maxval=5.0) for k in dt_keys]

    ref = jax.block_until_ready(_reference_depth_loss(depth_gt_nchw, depths_dt))

    # Multi-tile path (exercises the cross-tile vertical-gradient row carry).
    total_tiled, _ = depth_loss(depth_gt_nchw, depths_dt, tile_h=8)
    total_tiled = jax.block_until_ready(total_tiled)
    assert jnp.isfinite(total_tiled), "non-finite loss (tiled)"
    assert abs(float(total_tiled) - float(ref)) < 1e-4, (float(total_tiled), float(ref))

    # Default (auto) tile size — single tile at this toy resolution, carry-free
    # specialization of the kernel.
    total_auto, metrics = depth_loss(depth_gt_nchw, depths_dt)
    total_auto = jax.block_until_ready(total_auto)
    assert jnp.isfinite(total_auto), "non-finite loss (auto tile)"
    assert abs(float(total_auto) - float(ref)) < 1e-4, (float(total_auto), float(ref))

    # bf16 producer path: kernel upcasts after DMA (half the HBM traffic).
    gt_bf16 = depth_gt_nchw.astype(jnp.bfloat16)
    dts_bf16 = [d.astype(jnp.bfloat16) for d in depths_dt]
    ref_bf16 = jax.block_until_ready(_reference_depth_loss(gt_bf16, dts_bf16))
    total_bf16, _ = depth_loss(gt_bf16, dts_bf16)
    total_bf16 = jax.block_until_ready(total_bf16)
    assert jnp.isfinite(total_bf16), "non-finite loss (bf16)"
    assert abs(float(total_bf16) - float(ref_bf16)) < 2e-3, (float(total_bf16),
                                                             float(ref_bf16))

    print("KERNEL_OK")
</pallas_src>

<mosaic_0001>
module attributes {stable_mosaic.version = 11 : i64} {
  func.func @kernel(%arg0: i32, %arg1: memref<2x8x16xf32, #tpu.memory_space<vmem>>, %arg2: memref<2x8x16xf32, #tpu.memory_space<vmem>>, %arg3: memref<2x8x16xf32, #tpu.memory_space<vmem>>, %arg4: memref<2x8x16xf32, #tpu.memory_space<vmem>>, %arg5: memref<20xf32, #tpu.memory_space<smem>>, %arg6: memref<4x2x16xf32, #tpu.memory_space<vmem>>) attributes {dimension_semantics = [#tpu.dimension_semantics<arbitrary>], iteration_bounds = array<i64: 2>, scalar_prefetch = 0 : i64, scratch_operands = 1 : i64, tpu.core_type = #tpu.core_type<tc>, window_params = [{transform_indices = @transform_0, window_bounds = array<i64: 2, 8, 16>}, {transform_indices = @transform_1, window_bounds = array<i64: 2, 8, 16>}, {transform_indices = @transform_2, window_bounds = array<i64: 2, 8, 16>}, {transform_indices = @transform_3, window_bounds = array<i64: 2, 8, 16>}, {transform_indices = @transform_4, window_bounds = array<i64: 20>}]} {
    %c10_i32 = arith.constant 10 : i32
    %0 = arith.muli %arg0, %c10_i32 : i32
    %c0_i32 = arith.constant 0 : i32
    %1 = arith.cmpi eq, %arg0, %c0_i32 : i32
    %2 = arith.extui %1 : i1 to i32
    %c0_i32_0 = arith.constant 0 : i32
    %3 = arith.cmpi ne, %2, %c0_i32_0 : i32
    scf.if %3 {
      %cst_65 = arith.constant 0.000000e+00 : f32
      %209 = vector.broadcast %cst_65 : f32 to vector<4x2x16xf32>
      %c0_66 = arith.constant 0 : index
      %c0_67 = arith.constant 0 : index
      %c0_68 = arith.constant 0 : index
      %210 = vector.load %arg6[%c0_66, %c0_67, %c0_68] : memref<4x2x16xf32, #tpu.memory_space<vmem>>, vector<4x2x16xf32>
      tpu.vector_store %arg6[%c0_66, %c0_67, %c0_68], %209 {strides = array<i32>} : memref<4x2x16xf32, #tpu.memory_space<vmem>>, vector<4x2x16xf32>,
    } else {
    }
    %c0 = arith.constant 0 : index
    %c0_1 = arith.constant 0 : index
    %c0_2 = arith.constant 0 : index
    %4 = vector.load %arg1[%c0, %c0_1, %c0_2] : memref<2x8x16xf32, #tpu.memory_space<vmem>>, vector<2x8x16xf32>
    %cst = arith.constant 0.000000e+00 : f32
    %5 = vector.broadcast %cst : f32 to vector<2x8x16xf32>
    %6 = arith.cmpf ogt, %4, %5 : vector<2x8x16xf32>
    %7 = arith.extui %6 : vector<2x8x16xi1> to vector<2x8x16xi32>
    %8 = arith.sitofp %7 : vector<2x8x16xi32> to vector<2x8x16xf32>
    %9 = vector.shape_cast %8 : vector<2x8x16xf32> to vector<1x2x8x16xf32>
    %cst_3 = arith.constant dense<0.000000e+00> : vector<1xf32>
    %10 = vector.multi_reduction <add>, %9, %cst_3 [1, 2, 3] : vector<1x2x8x16xf32> to vector<1xf32>
    %11 = vector.shape_cast %10 : vector<1xf32> to vector<1x1x1x1xf32>
    %12 = vector.extract %11[0, 0, 0, 0] : f32 from vector<1x1x1x1xf32>
    %c0_i32_4 = arith.constant 0 : i32
    %13 = arith.addi %0, %c0_i32_4 : i32
    %14 = arith.index_cast %13 : i32 to index
    %15 = memref.load %arg5[%14] : memref<20xf32, #tpu.memory_space<smem>>
    memref.store %12, %arg5[%14] : memref<20xf32, #tpu.memory_space<smem>>
    %16 = vector.extract_strided_slice %8 {offsets = [0, 0, 1], sizes = [2, 8, 15], strides = [1, 1, 1]} : vector<2x8x16xf32> to vector<2x8x15xf32>
    %17 = vector.extract_strided_slice %8 {offsets = [0, 0, 0], sizes = [2, 8, 15], strides = [1, 1, 1]} : vector<2x8x16xf32> to vector<2x8x15xf32>
    %18 = arith.mulf %16, %17 : vector<2x8x15xf32>
    %cst_5 = arith.constant 1.000000e+00 : f32
    %19 = vector.broadcast %cst_5 : f32 to vector<2x8x15xf32>
    %20 = arith.subf %19, %18 : vector<2x8x15xf32>
    %21 = vector.extract_strided_slice %8 {offsets = [0, 1, 0], sizes = [2, 7, 16], strides = [1, 1, 1]} : vector<2x8x16xf32> to vector<2x7x16xf32>
    %22 = vector.extract_strided_slice %8 {offsets = [0, 0, 0], sizes = [2, 7, 16], strides = [1, 1, 1]} : vector<2x8x16xf32> to vector<2x7x16xf32>
    %23 = arith.mulf %21, %22 : vector<2x7x16xf32>
    %cst_6 = arith.constant 1.000000e+00 : f32
    %24 = vector.broadcast %cst_6 : f32 to vector<2x7x16xf32>
    %25 = arith.subf %24, %23 : vector<2x7x16xf32>
    %26 = vector.extract_strided_slice %8 {offsets = [0, 0, 0], sizes = [2, 1, 16], strides = [1, 1, 1]} : vector<2x8x16xf32> to vector<2x1x16xf32>
    %27 = vector.shape_cast %26 : vector<2x1x16xf32> to vector<2x16xf32>
    %c3 = arith.constant 3 : index
    %c0_7 = arith.constant 0 : index
    %c0_8 = arith.constant 0 : index
    %28 = vector.load %arg6[%c3, %c0_7, %c0_8] : memref<4x2x16xf32, #tpu.memory_space<vmem>>, vector<1x2x16xf32>
    %29 = vector.shape_cast %28 : vector<1x2x16xf32> to vector<2x16xf32>
    %30 = arith.mulf %27, %29 : vector<2x16xf32>
    %cst_9 = arith.constant 1.000000e+00 : f32
    %31 = vector.broadcast %cst_9 : f32 to vector<2x16xf32>
    %32 = arith.subf %31, %30 : vector<2x16xf32>
    %c0_i32_10 = arith.constant 0 : i32
    %33 = arith.cmpi sgt, %arg0, %c0_i32_10 : i32
    %34 = arith.extui %33 : i1 to i32
    %35 = arith.sitofp %34 : i32 to f32
    %c0_11 = arith.constant 0 : index
    %c0_12 = arith.constant 0 : index
    %c0_13 = arith.constant 0 : index
    %36 = vector.load %arg2[%c0_11, %c0_12, %c0_13] : memref<2x8x16xf32, #tpu.memory_space<vmem>>, vector<2x8x16xf32>
    %37 = arith.subf %4, %36 : vector<2x8x16xf32>
    %38 = math.absf %37 : vector<2x8x16xf32>
    %39 = arith.mulf %38, %8 : vector<2x8x16xf32>
    %40 = vector.shape_cast %39 : vector<2x8x16xf32> to vector<1x2x8x16xf32>
    %cst_14 = arith.constant dense<0.000000e+00> : vector<1xf32>
    %41 = vector.multi_reduction <add>, %40, %cst_14 [1, 2, 3] : vector<1x2x8x16xf32> to vector<1xf32>
    %42 = vector.shape_cast %41 : vector<1xf32> to vector<1x1x1x1xf32>
    %43 = vector.extract %42[0, 0, 0, 0] : f32 from vector<1x1x1x1xf32>
    %c1_i32 = arith.constant 1 : i32
    %44 = arith.addi %0, %c1_i32 : i32
    %c0_i32_15 = arith.constant 0 : i32
    %45 = arith.addi %44, %c0_i32_15 : i32
    %46 = arith.index_cast %45 : i32 to index
    %47 = memref.load %arg5[%46] : memref<20xf32, #tpu.memory_space<smem>>
    memref.store %43, %arg5[%46] : memref<20xf32, #tpu.memory_space<smem>>
    %48 = vector.extract_strided_slice %36 {offsets = [0, 0, 1], sizes = [2, 8, 15], strides = [1, 1, 1]} : vector<2x8x16xf32> to vector<2x8x15xf32>
    %49 = vector.extract_strided_slice %36 {offsets = [0, 0, 0], sizes = [2, 8, 15], strides = [1, 1, 1]} : vector<2x8x16xf32> to vector<2x8x15xf32>
    %50 = arith.subf %48, %49 : vector<2x8x15xf32>
    %51 = math.absf %50 : vector<2x8x15xf32>
    %52 = arith.mulf %20, %51 : vector<2x8x15xf32>
    %53 = vector.shape_cast %52 : vector<2x8x15xf32> to vector<1x2x8x15xf32>
    %cst_16 = arith.constant dense<0.000000e+00> : vector<1xf32>
    %54 = vector.multi_reduction <add>, %53, %cst_16 [1, 2, 3] : vector<1x2x8x15xf32> to vector<1xf32>
    %55 = vector.shape_cast %54 : vector<1xf32> to vector<1x1x1x1xf32>
    %56 = vector.extract %55[0, 0, 0, 0] : f32 from vector<1x1x1x1xf32>
    %c2_i32 = arith.constant 2 : i32
    %57 = arith.addi %0, %c2_i32 : i32
    %c0_i32_17 = arith.constant 0 : i32
    %58 = arith.addi %57, %c0_i32_17 : i32
    %59 = arith.index_cast %58 : i32 to index
    %60 = memref.load %arg5[%59] : memref<20xf32, #tpu.memory_space<smem>>
    memref.store %56, %arg5[%59] : memref<20xf32, #tpu.memory_space<smem>>
    %61 = vector.extract_strided_slice %36 {offsets = [0, 1, 0], sizes = [2, 7, 16], strides = [1, 1, 1]} : vector<2x8x16xf32> to vector<2x7x16xf32>
    %62 = vector.extract_strided_slice %36 {offsets = [0, 0, 0], sizes = [2, 7, 16], strides = [1, 1, 1]} : vector<2x8x16xf32> to vector<2x7x16xf32>
    %63 = arith.subf %61, %62 : vector<2x7x16xf32>
    %64 = math.absf %63 : vector<2x7x16xf32>
    %65 = arith.mulf %25, %64 : vector<2x7x16xf32>
    %66 = vector.shape_cast %65 : vector<2x7x16xf32> to vector<1x2x7x16xf32>
    %cst_18 = arith.constant dense<0.000000e+00> : vector<1xf32>
    %67 = vector.multi_reduction <add>, %66, %cst_18 [1, 2, 3] : vector<1x2x7x16xf32> to vector<1xf32>
    %68 = vector.shape_cast %67 : vector<1xf32> to vector<1x1x1x1xf32>
    %69 = vector.extract %68[0, 0, 0, 0] : f32 from vector<1x1x1x1xf32>
    %70 = vector.extract_strided_slice %36 {offsets = [0, 0, 0], sizes = [2, 1, 16], strides = [1, 1, 1]} : vector<2x8x16xf32> to vector<2x1x16xf32>
    %71 = vector.shape_cast %70 : vector<2x1x16xf32> to vector<2x16xf32>
    %c0_19 = arith.constant 0 : index
    %c0_20 = arith.constant 0 : index
    %c0_21 = arith.constant 0 : index
    %72 = vector.load %arg6[%c0_19, %c0_20, %c0_21] : memref<4x2x16xf32, #tpu.memory_space<vmem>>, vector<1x2x16xf32>
    %73 = vector.shape_cast %72 : vector<1x2x16xf32> to vector<2x16xf32>
    %74 = arith.subf %71, %73 : vector<2x16xf32>
    %75 = math.absf %74 : vector<2x16xf32>
    %76 = arith.mulf %32, %75 : vector<2x16xf32>
    %77 = vector.shape_cast %76 : vector<2x16xf32> to vector<1x2x16xf32>
    %cst_22 = arith.constant dense<0.000000e+00> : vector<1xf32>
    %78 = vector.multi_reduction <add>, %77, %cst_22 [1, 2] : vector<1x2x16xf32> to vector<1xf32>
    %79 = vector.shape_cast %78 : vector<1xf32> to vector<1x1x1xf32>
    %80 = vector.extract %79[0, 0, 0] : f32 from vector<1x1x1xf32>
    %81 = arith.mulf %35, %80 : f32
    %82 = arith.addf %69, %81 : f32
    %83 = vector.extract_strided_slice %36 {offsets = [0, 7, 0], sizes = [2, 1, 16], strides = [1, 1, 1]} : vector<2x8x16xf32> to vector<2x1x16xf32>
    %84 = vector.shape_cast %83 : vector<2x1x16xf32> to vector<2x16xf32>
    %c0_23 = arith.constant 0 : index
    %c0_24 = arith.constant 0 : index
    %c0_25 = arith.constant 0 : index
    %85 = vector.load %arg6[%c0_23, %c0_24, %c0_25] : memref<4x2x16xf32, #tpu.memory_space<vmem>>, vector<1x2x16xf32>
    %86 = vector.shape_cast %85 : vector<1x2x16xf32> to vector<2x16xf32>
    %87 = vector.shape_cast %84 : vector<2x16xf32> to vector<1x2x16xf32>
    tpu.vector_store %arg6[%c0_23, %c0_24, %c0_25], %87 {strides = array<i32>} : memref<4x2x16xf32, #tpu.memory_space<vmem>>, vector<1x2x16xf32>,
    %c3_i32 = arith.constant 3 : i32
    %88 = arith.addi %0, %c3_i32 : i32
    %c0_i32_26 = arith.constant 0 : i32
    %89 = arith.addi %88, %c0_i32_26 : i32
    %90 = arith.index_cast %89 : i32 to index
    %91 = memref.load %arg5[%90] : memref<20xf32, #tpu.memory_space<smem>>
    memref.store %82, %arg5[%90] : memref<20xf32, #tpu.memory_space<smem>>
    %c0_27 = arith.constant 0 : index
    %c0_28 = arith.constant 0 : index
    %c0_29 = arith.constant 0 : index
    %92 = vector.load %arg3[%c0_27, %c0_28, %c0_29] : memref<2x8x16xf32, #tpu.memory_space<vmem>>, vector<2x8x16xf32>
    %93 = arith.subf %4, %92 : vector<2x8x16xf32>
    %94 = math.absf %93 : vector<2x8x16xf32>
    %95 = arith.mulf %94, %8 : vector<2x8x16xf32>
    %96 = vector.shape_cast %95 : vector<2x8x16xf32> to vector<1x2x8x16xf32>
    %cst_30 = arith.constant dense<0.000000e+00> : vector<1xf32>
    %97 = vector.multi_reduction <add>, %96, %cst_30 [1, 2, 3] : vector<1x2x8x16xf32> to vector<1xf32>
    %98 = vector.shape_cast %97 : vector<1xf32> to vector<1x1x1x1xf32>
    %99 = vector.extract %98[0, 0, 0, 0] : f32 from vector<1x1x1x1xf32>
    %c1_i32_31 = arith.constant 1 : i32
    %100 = arith.addi %0, %c1_i32_31 : i32
    %c3_i32_32 = arith.constant 3 : i32
    %101 = arith.addi %100, %c3_i32_32 : i32
    %102 = arith.index_cast %101 : i32 to index
    %103 = memref.load %arg5[%102] : memref<20xf32, #tpu.memory_space<smem>>
    memref.store %99, %arg5[%102] : memref<20xf32, #tpu.memory_space<smem>>
    %104 = vector.extract_strided_slice %92 {offsets = [0, 0, 1], sizes = [2, 8, 15], strides = [1, 1, 1]} : vector<2x8x16xf32> to vector<2x8x15xf32>
    %105 = vector.extract_strided_slice %92 {offsets = [0, 0, 0], sizes = [2, 8, 15], strides = [1, 1, 1]} : vector<2x8x16xf32> to vector<2x8x15xf32>
    %106 = arith.subf %104, %105 : vector<2x8x15xf32>
    %107 = math.absf %106 : vector<2x8x15xf32>
    %108 = arith.mulf %20, %107 : vector<2x8x15xf32>
    %109 = vector.shape_cast %108 : vector<2x8x15xf32> to vector<1x2x8x15xf32>
    %cst_33 = arith.constant dense<0.000000e+00> : vector<1xf32>
    %110 = vector.multi_reduction <add>, %109, %cst_33 [1, 2, 3] : vector<1x2x8x15xf32> to vector<1xf32>
    %111 = vector.shape_cast %110 : vector<1xf32> to vector<1x1x1x1xf32>
    %112 = vector.extract %111[0, 0, 0, 0] : f32 from vector<1x1x1x1xf32>
    %c2_i32_34 = arith.constant 2 : i32
    %113 = arith.addi %0, %c2_i32_34 : i32
    %c3_i32_35 = arith.constant 3 : i32
    %114 = arith.addi %113, %c3_i32_35 : i32
    %115 = arith.index_cast %114 : i32 to index
    %116 = memref.load %arg5[%115] : memref<20xf32, #tpu.memory_space<smem>>
    memref.store %112, %arg5[%115] : memref<20xf32, #tpu.memory_space<smem>>
    %117 = vector.extract_strided_slice %92 {offsets = [0, 1, 0], sizes = [2, 7, 16], strides = [1, 1, 1]} : vector<2x8x16xf32> to vector<2x7x16xf32>
    %118 = vector.extract_strided_slice %92 {offsets = [0, 0, 0], sizes = [2, 7, 16], strides = [1, 1, 1]} : vector<2x8x16xf32> to vector<2x7x16xf32>
    %119 = arith.subf %117, %118 : vector<2x7x16xf32>
    %120 = math.absf %119 : vector<2x7x16xf32>
    %121 = arith.mulf %25, %120 : vector<2x7x16xf32>
    %122 = vector.shape_cast %121 : vector<2x7x16xf32> to vector<1x2x7x16xf32>
    %cst_36 = arith.constant dense<0.000000e+00> : vector<1xf32>
    %123 = vector.multi_reduction <add>, %122, %cst_36 [1, 2, 3] : vector<1x2x7x16xf32> to vector<1xf32>
    %124 = vector.shape_cast %123 : vector<1xf32> to vector<1x1x1x1xf32>
    %125 = vector.extract %124[0, 0, 0, 0] : f32 from vector<1x1x1x1xf32>
    %126 = vector.extract_strided_slice %92 {offsets = [0, 0, 0], sizes = [2, 1, 16], strides = [1, 1, 1]} : vector<2x8x16xf32> to vector<2x1x16xf32>
    %127 = vector.shape_cast %126 : vector<2x1x16xf32> to vector<2x16xf32>
    %c1 = arith.constant 1 : index
    %c0_37 = arith.constant 0 : index
    %c0_38 = arith.constant 0 : index
    %128 = vector.load %arg6[%c1, %c0_37, %c0_38] : memref<4x2x16xf32, #tpu.memory_space<vmem>>, vector<1x2x16xf32>
    %129 = vector.shape_cast %128 : vector<1x2x16xf32> to vector<2x16xf32>
    %130 = arith.subf %127, %129 : vector<2x16xf32>
    %131 = math.absf %130 : vector<2x16xf32>
    %132 = arith.mulf %32, %131 : vector<2x16xf32>
    %133 = vector.shape_cast %132 : vector<2x16xf32> to vector<1x2x16xf32>
    %cst_39 = arith.constant dense<0.000000e+00> : vector<1xf32>
    %134 = vector.multi_reduction <add>, %133, %cst_39 [1, 2] : vector<1x2x16xf32> to vector<1xf32>
    %135 = vector.shape_cast %134 : vector<1xf32> to vector<1x1x1xf32>
    %136 = vector.extract %135[0, 0, 0] : f32 from vector<1x1x1xf32>
    %137 = arith.mulf %35, %136 : f32
    %138 = arith.addf %125, %137 : f32
    %139 = vector.extract_strided_slice %92 {offsets = [0, 7, 0], sizes = [2, 1, 16], strides = [1, 1, 1]} : vector<2x8x16xf32> to vector<2x1x16xf32>
    %140 = vector.shape_cast %139 : vector<2x1x16xf32> to vector<2x16xf32>
    %c1_40 = arith.constant 1 : index
    %c0_41 = arith.constant 0 : index
    %c0_42 = arith.constant 0 : index
    %141 = vector.load %arg6[%c1_40, %c0_41, %c0_42] : memref<4x2x16xf32, #tpu.memory_space<vmem>>, vector<1x2x16xf32>
    %142 = vector.shape_cast %141 : vector<1x2x16xf32> to vector<2x16xf32>
    %143 = vector.shape_cast %140 : vector<2x16xf32> to vector<1x2x16xf32>
    tpu.vector_store %arg6[%c1_40, %c0_41, %c0_42], %143 {strides = array<i32>} : memref<4x2x16xf32, #tpu.memory_space<vmem>>, vector<1x2x16xf32>,
    %c3_i32_43 = arith.constant 3 : i32
    %144 = arith.addi %0, %c3_i32_43 : i32
    %c3_i32_44 = arith.constant 3 : i32
    %145 = arith.addi %144, %c3_i32_44 : i32
    %146 = arith.index_cast %145 : i32 to index
    %147 = memref.load %arg5[%146] : memref<20xf32, #tpu.memory_space<smem>>
    memref.store %138, %arg5[%146] : memref<20xf32, #tpu.memory_space<smem>>
    %c0_45 = arith.constant 0 : index
    %c0_46 = arith.constant 0 : index
    %c0_47 = arith.constant 0 : index
    %148 = vector.load %arg4[%c0_45, %c0_46, %c0_47] : memref<2x8x16xf32, #tpu.memory_space<vmem>>, vector<2x8x16xf32>
    %149 = arith.subf %4, %148 : vector<2x8x16xf32>
    %150 = math.absf %149 : vector<2x8x16xf32>
    %151 = arith.mulf %150, %8 : vector<2x8x16xf32>
    %152 = vector.shape_cast %151 : vector<2x8x16xf32> to vector<1x2x8x16xf32>
    %cst_48 = arith.constant dense<0.000000e+00> : vector<1xf32>
    %153 = vector.multi_reduction <add>, %152, %cst_48 [1, 2, 3] : vector<1x2x8x16xf32> to vector<1xf32>
    %154 = vector.shape_cast %153 : vector<1xf32> to vector<1x1x1x1xf32>
    %155 = vector.extract %154[0, 0, 0, 0] : f32 from vector<1x1x1x1xf32>
    %c1_i32_49 = arith.constant 1 : i32
    %156 = arith.addi %0, %c1_i32_49 : i32
    %c6_i32 = arith.constant 6 : i32
    %157 = arith.addi %156, %c6_i32 : i32
    %158 = arith.index_cast %157 : i32 to index
    %159 = memref.load %arg5[%158] : memref<20xf32, #tpu.memory_space<smem>>
    memref.store %155, %arg5[%158] : memref<20xf32, #tpu.memory_space<smem>>
    %160 = vector.extract_strided_slice %148 {offsets = [0, 0, 1], sizes = [2, 8, 15], strides = [1, 1, 1]} : vector<2x8x16xf32> to vector<2x8x15xf32>
    %161 = vector.extract_strided_slice %148 {offsets = [0, 0, 0], sizes = [2, 8, 15], strides = [1, 1, 1]} : vector<2x8x16xf32> to vector<2x8x15xf32>
    %162 = arith.subf %160, %161 : vector<2x8x15xf32>
    %163 = math.absf %162 : vector<2x8x15xf32>
    %164 = arith.mulf %20, %163 : vector<2x8x15xf32>
    %165 = vector.shape_cast %164 : vector<2x8x15xf32> to vector<1x2x8x15xf32>
    %cst_50 = arith.constant dense<0.000000e+00> : vector<1xf32>
    %166 = vector.multi_reduction <add>, %165, %cst_50 [1, 2, 3] : vector<1x2x8x15xf32> to vector<1xf32>
    %167 = vector.shape_cast %166 : vector<1xf32> to vector<1x1x1x1xf32>
    %168 = vector.extract %167[0, 0, 0, 0] : f32 from vector<1x1x1x1xf32>
    %c2_i32_51 = arith.constant 2 : i32
    %169 = arith.addi %0, %c2_i32_51 : i32
    %c6_i32_52 = arith.constant 6 : i32
    %170 = arith.addi %169, %c6_i32_52 : i32
    %171 = arith.index_cast %170 : i32 to index
    %172 = memref.load %arg5[%171] : memref<20xf32, #tpu.memory_space<smem>>
    memref.store %168, %arg5[%171] : memref<20xf32, #tpu.memory_space<smem>>
    %173 = vector.extract_strided_slice %148 {offsets = [0, 1, 0], sizes = [2, 7, 16], strides = [1, 1, 1]} : vector<2x8x16xf32> to vector<2x7x16xf32>
    %174 = vector.extract_strided_slice %148 {offsets = [0, 0, 0], sizes = [2, 7, 16], strides = [1, 1, 1]} : vector<2x8x16xf32> to vector<2x7x16xf32>
    %175 = arith.subf %173, %174 : vector<2x7x16xf32>
    %176 = math.absf %175 : vector<2x7x16xf32>
    %177 = arith.mulf %25, %176 : vector<2x7x16xf32>
    %178 = vector.shape_cast %177 : vector<2x7x16xf32> to vector<1x2x7x16xf32>
    %cst_53 = arith.constant dense<0.000000e+00> : vector<1xf32>
    %179 = vector.multi_reduction <add>, %178, %cst_53 [1, 2, 3] : vector<1x2x7x16xf32> to vector<1xf32>
    %180 = vector.shape_cast %179 : vector<1xf32> to vector<1x1x1x1xf32>
    %181 = vector.extract %180[0, 0, 0, 0] : f32 from vector<1x1x1x1xf32>
    %182 = vector.extract_strided_slice %148 {offsets = [0, 0, 0], sizes = [2, 1, 16], strides = [1, 1, 1]} : vector<2x8x16xf32> to vector<2x1x16xf32>
    %183 = vector.shape_cast %182 : vector<2x1x16xf32> to vector<2x16xf32>
    %c2 = arith.constant 2 : index
    %c0_54 = arith.constant 0 : index
    %c0_55 = arith.constant 0 : index
    %184 = vector.load %arg6[%c2, %c0_54, %c0_55] : memref<4x2x16xf32, #tpu.memory_space<vmem>>, vector<1x2x16xf32>
    %185 = vector.shape_cast %184 : vector<1x2x16xf32> to vector<2x16xf32>
    %186 = arith.subf %183, %185 : vector<2x16xf32>
    %187 = math.absf %186 : vector<2x16xf32>
    %188 = arith.mulf %32, %187 : vector<2x16xf32>
    %189 = vector.shape_cast %188 : vector<2x16xf32> to vector<1x2x16xf32>
    %cst_56 = arith.constant dense<0.000000e+00> : vector<1xf32>
    %190 = vector.multi_reduction <add>, %189, %cst_56 [1, 2] : vector<1x2x16xf32> to vector<1xf32>
    %191 = vector.shape_cast %190 : vector<1xf32> to vector<1x1x1xf32>
    %192 = vector.extract %191[0, 0, 0] : f32 from vector<1x1x1xf32>
    %193 = arith.mulf %35, %192 : f32
    %194 = arith.addf %181, %193 : f32
    %195 = vector.extract_strided_slice %148 {offsets = [0, 7, 0], sizes = [2, 1, 16], strides = [1, 1, 1]} : vector<2x8x16xf32> to vector<2x1x16xf32>
    %196 = vector.shape_cast %195 : vector<2x1x16xf32> to vector<2x16xf32>
    %c2_57 = arith.constant 2 : index
    %c0_58 = arith.constant 0 : index
    %c0_59 = arith.constant 0 : index
    %197 = vector.load %arg6[%c2_57, %c0_58, %c0_59] : memref<4x2x16xf32, #tpu.memory_space<vmem>>, vector<1x2x16xf32>
    %198 = vector.shape_cast %197 : vector<1x2x16xf32> to vector<2x16xf32>
    %199 = vector.shape_cast %196 : vector<2x16xf32> to vector<1x2x16xf32>
    tpu.vector_store %arg6[%c2_57, %c0_58, %c0_59], %199 {strides = array<i32>} : memref<4x2x16xf32, #tpu.memory_space<vmem>>, vector<1x2x16xf32>,
    %c3_i32_60 = arith.constant 3 : i32
    %200 = arith.addi %0, %c3_i32_60 : i32
    %c6_i32_61 = arith.constant 6 : i32
    %201 = arith.addi %200, %c6_i32_61 : i32
    %202 = arith.index_cast %201 : i32 to index
    %203 = memref.load %arg5[%202] : memref<20xf32, #tpu.memory_space<smem>>
    memref.store %194, %arg5[%202] : memref<20xf32, #tpu.memory_space<smem>>
    %204 = vector.extract_strided_slice %8 {offsets = [0, 7, 0], sizes = [2, 1, 16], strides = [1, 1, 1]} : vector<2x8x16xf32> to vector<2x1x16xf32>
    %205 = vector.shape_cast %204 : vector<2x1x16xf32> to vector<2x16xf32>
    %c3_62 = arith.constant 3 : index
    %c0_63 = arith.constant 0 : index
    %c0_64 = arith.constant 0 : index
    %206 = vector.load %arg6[%c3_62, %c0_63, %c0_64] : memref<4x2x16xf32, #tpu.memory_space<vmem>>, vector<1x2x16xf32>
    %207 = vector.shape_cast %206 : vector<1x2x16xf32> to vector<2x16xf32>
    %208 = vector.shape_cast %205 : vector<2x16xf32> to vector<1x2x16xf32>
    tpu.vector_store %arg6[%c3_62, %c0_63, %c0_64], %208 {strides = array<i32>} : memref<4x2x16xf32, #tpu.memory_space<vmem>>, vector<1x2x16xf32>,
    return
  }
  func.func @transform_0(%arg0: i32) -> (i32, i32, i32) {
    %c0_i32 = arith.constant 0 : i32
    %c0_i32_0 = arith.constant 0 : i32
    %c0_i32_1 = arith.constant 0 : i32
    return %c0_i32, %arg0, %c0_i32_0 : i32, i32, i32
  }
  func.func @transform_1(%arg0: i32) -> (i32, i32, i32) {
    %c0_i32 = arith.constant 0 : i32
    %c0_i32_0 = arith.constant 0 : i32
    %c0_i32_1 = arith.constant 0 : i32
    return %c0_i32, %arg0, %c0_i32_0 : i32, i32, i32
  }
  func.func @transform_2(%arg0: i32) -> (i32, i32, i32) {
    %c0_i32 = arith.constant 0 : i32
    %c0_i32_0 = arith.constant 0 : i32
    %c0_i32_1 = arith.constant 0 : i32
    return %c0_i32, %arg0, %c0_i32_0 : i32, i32, i32
  }
  func.func @transform_3(%arg0: i32) -> (i32, i32, i32) {
    %c0_i32 = arith.constant 0 : i32
    %c0_i32_0 = arith.constant 0 : i32
    %c0_i32_1 = arith.constant 0 : i32
    return %c0_i32, %arg0, %c0_i32_0 : i32, i32, i32
  }
  func.func @transform_4(%arg0: i32) -> i32 {
    %c0_i32 = arith.constant 0 : i32
    %c0_i32_0 = arith.constant 0 : i32
    return %c0_i32 : i32
  }
}

</mosaic_0001>

<llo_original>
// kernel: tpu_custom_call.1
$region0: #{tpu_custom_call.1}
  #allocation0 [shape = 'u32[]', space=smem, size = 0x4, offset = 0x4, fixed_abs, tag = 'smem constant byte address 0x4 - core index']
  #allocation1 [shape = 'u32[144,128]{1,0:T(1,128)}', space=vmem, size = 0x12000, scoped, tag = 'internal scratch']
  #allocation2 [shape = 'f32[4,2,16]{2,1,0:T(2,128)}', space=vmem, size = 0x1000, scoped, tag = 'scratch operand']
  %s0 = inlined_call_operand.hbm [shape: f32[2,16,16], index: 0, kind: input, shape index: {}]
  %s1 = inlined_call_operand.hbm [shape: f32[2,16,16], index: 1, kind: input, shape index: {}]
  %s2 = inlined_call_operand.hbm [shape: f32[2,16,16], index: 2, kind: input, shape index: {}]
  %s3 = inlined_call_operand.hbm [shape: f32[2,16,16], index: 3, kind: input, shape index: {}]
  %s4 = inlined_call_operand.hbm [shape: f32[20], index: 4, kind: output, shape index: {}]
  %s5 = sld [smem:[#allocation0]]
  $region69: #{tpu_custom_call.1} parent=0
    _
  %s7 = ssub.s32 1, %s5
  %s8 = scalar_select 0, %s7, %s5
  $region1: #{tpu_custom_call.1} parent=0
    #allocation3 [shape = 'u8[16384]{0}', space=vmem, size = 0x4000, scoped, tag = 'input window, operand 0']
    #allocation4 [shape = 's32[2]{0}', space=sflag, size = 0x8, scoped, tag = 'scoped memory for tpu_custom_call.1']
    #allocation5 [shape = 's32[2]{0}', space=sflag, size = 0x8, scoped, tag = 'scoped memory for tpu_custom_call.1']
    #allocation6 [shape = 'u8[16384]{0}', space=vmem, size = 0x4000, scoped, tag = 'input window, operand 1']
    #allocation7 [shape = 's32[2]{0}', space=sflag, size = 0x8, scoped, tag = 'scoped memory for tpu_custom_call.1']
    #allocation8 [shape = 'u8[16384]{0}', space=vmem, size = 0x4000, scoped, tag = 'input window, operand 2']
    #allocation9 [shape = 'u8[16384]{0}', space=vmem, size = 0x4000, scoped, tag = 'input window, operand 3']
    #allocation10 [shape = 's32[2]{0}', space=sflag, size = 0x8, scoped, tag = 'scoped memory for tpu_custom_call.1']
    #allocation11 [shape = 'u8[512]{0}', space=smem, size = 0x200, scoped, tag = 'output window, operand 0, single buffered']
    %9 = vsyncpa [#allocation4], 0
    %s10 = scalar_lea.sflag [#allocation4], 1
    %11 = vsyncpa %s10, 0
    %12 = vsyncpa [#allocation7], 0
    %s13 = scalar_lea.sflag [#allocation7], 1
    %14 = vsyncpa %s13, 0
    %15 = vsyncpa [#allocation10], 0
    %s16 = scalar_lea.sflag [#allocation10], 1
    %17 = vsyncpa %s16, 0
    %18 = vsyncpa [#allocation5], 0
    loop: start=0, step=1, limit=4
    $region2: #{tpu_custom_call.1} parent=1 // loop_pre_header
      _
    $region3: #{tpu_custom_call.1} parent=1 // loop_header
      %s20 = sphi 0, %s24
      %p21 = scmp.ge.s32.totalorder %s20, 4
      %s30 = sphi 0, %s32
      %s33 = sphi 0, %s30
      %s34 = sphi 0, %s33
      %s50 = sphi 0, %s34
      %s56 = sphi 0, %s58
      %s59 = sphi 0, %s56
      %s60 = sphi 0, %s59
      %s76 = sphi 0, %s60
      %s82 = sphi 0, %s84
      %s85 = sphi 0, %s82
      %s86 = sphi 0, %s85
      %s102 = sphi 0, %s86
      %s108 = sphi 0, %s110
      %s111 = sphi 0, %s108
      %s112 = sphi 0, %s111
      %s128 = sphi 0, %s112
      %s132 = sphi 0, %s132
      %s134 = sphi 0, %s132
      %s135 = sphi 0, %s134
      %s149 = sphi 0, %s135
    $region4: #{tpu_custom_call.1} parent=1 // loop_header_branch
      %23 = sbr.rel (%p21) target = $region8
    $region5: #{tpu_custom_call.1} parent=1 // loop_body
      %s25 = ssub.s32 %s20, 1
      %s26 = ssub.s32 %s20, 2
      %s27 = sadd.s32 %s20, 1
      %s28 = ssub.s32 %s20, %s27
      %p29 = scmp.eq.s32.totalorder %s28, 0
      %s31 = sadd.s32 %s30, 1
      %s32 = scalar_select %p29, %s30, %s31
      %p35 = pneg %p29
      %p36 = scmp.eq.s32.totalorder %s20, 1
      %p37 = por %p35, %p36
      %p38 = scmp.ne.s32.totalorder %s30, %s33
      %p39 = scmp.eq.s32.totalorder %s20, 0
      %p40 = por %p38, %p39
      %p41 = scmp.ne.s32.totalorder %s30, %s33
      %p42 = scmp.eq.s32.totalorder %s25, 1
      %p43 = por %p41, %p42
      %p44 = scmp.ne.s32.totalorder %s33, %s34
      %p45 = scmp.eq.s32.totalorder %s25, 0
      %p46 = por %p44, %p45
      %p47 = scmp.ne.s32.totalorder %s33, %s34
      %p48 = scmp.eq.s32.totalorder %s26, 1
      %p49 = por %p47, %p48
      %p51 = scmp.ne.s32.totalorder %s34, %s50
      %p52 = scmp.eq.s32.totalorder %s26, 0
      %p53 = por %p51, %p52
      %s54 = ssub.s32 %s20, %s27
      %p55 = scmp.eq.s32.totalorder %s54, 0
      %s57 = sadd.s32 %s56, 1
      %s58 = scalar_select %p55, %s56, %s57
      %p61 = pneg %p55
      %p62 = scmp.eq.s32.totalorder %s20, 1
      %p63 = por %p61, %p62
      %p64 = scmp.ne.s32.totalorder %s56, %s59
      %p65 = scmp.eq.s32.totalorder %s20, 0
      %p66 = por %p64, %p65
      %p67 = scmp.ne.s32.totalorder %s56, %s59
      %p68 = scmp.eq.s32.totalorder %s25, 1
      %p69 = por %p67, %p68
      %p70 = scmp.ne.s32.totalorder %s59, %s60
      %p71 = scmp.eq.s32.totalorder %s25, 0
      %p72 = por %p70, %p71
      %p73 = scmp.ne.s32.totalorder %s59, %s60
      %p74 = scmp.eq.s32.totalorder %s26, 1
      %p75 = por %p73, %p74
      %p77 = scmp.ne.s32.totalorder %s60, %s76
      %p78 = scmp.eq.s32.totalorder %s26, 0
      %p79 = por %p77, %p78
      %s80 = ssub.s32 %s20, %s27
      %p81 = scmp.eq.s32.totalorder %s80, 0
      %s83 = sadd.s32 %s82, 1
      %s84 = scalar_select %p81, %s82, %s83
      %p87 = pneg %p81
      %p88 = scmp.eq.s32.totalorder %s20, 1
      %p89 = por %p87, %p88
      %p90 = scmp.ne.s32.totalorder %s82, %s85
      %p91 = scmp.eq.s32.totalorder %s20, 0
      %p92 = por %p90, %p91
      %p93 = scmp.ne.s32.totalorder %s82, %s85
      %p94 = scmp.eq.s32.totalorder %s25, 1
      %p95 = por %p93, %p94
      %p96 = scmp.ne.s32.totalorder %s85, %s86
      %p97 = scmp.eq.s32.totalorder %s25, 0
      %p98 = por %p96, %p97
      %p99 = scmp.ne.s32.totalorder %s85, %s86
      %p100 = scmp.eq.s32.totalorder %s26, 1
      %p101 = por %p99, %p100
      %p103 = scmp.ne.s32.totalorder %s86, %s102
      %p104 = scmp.eq.s32.totalorder %s26, 0
      %p105 = por %p103, %p104
      %s106 = ssub.s32 %s20, %s27
      %p107 = scmp.eq.s32.totalorder %s106, 0
      %s109 = sadd.s32 %s108, 1
      %s110 = scalar_select %p107, %s108, %s109
      %p113 = pneg %p107
      %p114 = scmp.eq.s32.totalorder %s20, 1
      %p115 = por %p113, %p114
      %p116 = scmp.ne.s32.totalorder %s108, %s111
      %p117 = scmp.eq.s32.totalorder %s20, 0
      %p118 = por %p116, %p117
      %p119 = scmp.ne.s32.totalorder %s108, %s111
      %p120 = scmp.eq.s32.totalorder %s25, 1
      %p121 = por %p119, %p120
      %p122 = scmp.ne.s32.totalorder %s111, %s112
      %p123 = scmp.eq.s32.totalorder %s25, 0
      %p124 = por %p122, %p123
      %p125 = scmp.ne.s32.totalorder %s111, %s112
      %p126 = scmp.eq.s32.totalorder %s26, 1
      %p127 = por %p125, %p126
      %p129 = scmp.ne.s32.totalorder %s112, %s128
      %p130 = scmp.eq.s32.totalorder %s26, 0
      %p131 = por %p129, %p130
      %s133 = sadd.s32 %s132, 1
      %p136 = scmp.eq.s32.totalorder %s20, 1
      %p137 = scmp.ne.s32.totalorder %s132, %s134
      %p138 = scmp.eq.s32.totalorder %s20, 0
      %p139 = por %p137, %p138
      %p140 = scmp.ne.s32.totalorder %s132, %s134
      %p141 = scmp.eq.s32.totalorder %s25, 1
      %p142 = por %p140, %p141
      %p143 = scmp.ne.s32.totalorder %s134, %s135
      %p144 = scmp.eq.s32.totalorder %s25, 0
      %p145 = por %p143, %p144
      %p146 = scmp.ne.s32.totalorder %s134, %s135
      %p147 = scmp.eq.s32.totalorder %s26, 1
      %p148 = por %p146, %p147
      %p150 = scmp.ne.s32.totalorder %s135, %s149
      %p151 = scmp.eq.s32.totalorder %s26, 0
      %p152 = por %p150, %p151
      %p153 = scmp.le.s32.totalorder 1, %s20
      %p154 = scmp.lt.s32.totalorder %s20, 3
      %p155 = pnand %p153, %p154
      %p156 = pneg %p155
      // Predicated region
      $region9: #{tpu_custom_call.1} parent=5 // pred_check
        _
      $region10: #{tpu_custom_call.1} parent=5 // pred_check_branch
        %158 = sbr.rel (%p155) target = $region12
      $region11: #{tpu_custom_call.1} parent=5 // pred_region
        %s159 = ssub.s32 %s20, 1
      $region12: #{tpu_custom_call.1} parent=5 // pred_fallthru
        _
      %p160 = scmp.lt.s32.totalorder %s20, 2
      // Predicated region
      $region13: #{tpu_custom_call.1} parent=5 // pred_check
        %p161 = pneg %p160
      $region14: #{tpu_custom_call.1} parent=5 // pred_check_branch
        %163 = sbr.rel (%p161) target = $region16
      $region15: #{tpu_custom_call.1} parent=5 // pred_region
        // Predicated region
        $region17: #{tpu_custom_call.1} parent=15 // pred_check
          %p164 = pneg %p40
        $region18: #{tpu_custom_call.1} parent=15 // pred_check_branch
          %166 = sbr.rel (%p164) target = $region20
        $region19: #{tpu_custom_call.1} parent=15 // pred_region
          %s167 = sand.u32 %s30, 1
          %s168 = scalar_lea.sflag [#allocation4], %s167
          %s169 = sand.u32 %s30, 1
          %s170 = smul.addr %s169, 16
          %s171 = scalar_lea.vmem [#allocation3], %s170
          %s173 = ssub.s32 256, 256
          %174 = vsyncadd %s168, %s173
          %s175 = smul.addr %s20, 128
          %s176 = scalar_lea.hbm %s0, %s175
          %s177 = sshll.u32 %s171, 4
          %s178 = int_to_ptr.vmem [resolvable:$true] %s177
          %183 = dma.hbm_to_vmem [thread:$0]  %s176, 256, %s178, %s168, 256, 128, 8
        $region20: #{tpu_custom_call.1} parent=15 // pred_fallthru
          _
        // Predicated region
        $region21: #{tpu_custom_call.1} parent=15 // pred_check
          %p184 = pneg %p66
        $region22: #{tpu_custom_call.1} parent=15 // pred_check_branch
          %186 = sbr.rel (%p184) target = $region24
        $region23: #{tpu_custom_call.1} parent=15 // pred_region
          %s187 = sand.u32 %s20, 1
          %s188 = scalar_lea.sflag [#allocation7], %s187
          %s189 = sand.u32 %s56, 1
          %s190 = smul.addr %s189, 16
          %s191 = scalar_lea.vmem [#allocation6], %s190
          %s193 = ssub.s32 256, 256
          %194 = vsyncadd %s188, %s193
          %s195 = smul.addr %s20, 128
          %s196 = scalar_lea.hbm %s1, %s195
          %s197 = sshll.u32 %s191, 4
          %s198 = int_to_ptr.vmem [resolvable:$true] %s197
          %203 = dma.hbm_to_vmem [thread:$0]  %s196, 256, %s198, %s188, 256, 128, 8
        $region24: #{tpu_custom_call.1} parent=15 // pred_fallthru
          _
        // Predicated region
        $region25: #{tpu_custom_call.1} parent=15 // pred_check
          %p204 = pneg %p92
        $region26: #{tpu_custom_call.1} parent=15 // pred_check_branch
          %206 = sbr.rel (%p204) target = $region28
        $region27: #{tpu_custom_call.1} parent=15 // pred_region
          %s207 = sand.u32 %s20, 1
          %s208 = scalar_lea.sflag [#allocation7], %s207
          %s209 = sand.u32 %s82, 1
          %s210 = smul.addr %s209, 16
          %s211 = scalar_lea.vmem [#allocation8], %s210
          %s213 = ssub.s32 256, 256
          %214 = vsyncadd %s208, %s213
          %s215 = smul.addr %s20, 128
          %s216 = scalar_lea.hbm %s2, %s215
          %s217 = sshll.u32 %s211, 4
          %s218 = int_to_ptr.vmem [resolvable:$true] %s217
          %223 = dma.hbm_to_vmem [thread:$0]  %s216, 256, %s218, %s208, 256, 128, 8
        $region28: #{tpu_custom_call.1} parent=15 // pred_fallthru
          _
        // Predicated region
        $region29: #{tpu_custom_call.1} parent=15 // pred_check
          %p224 = pneg %p118
        $region30: #{tpu_custom_call.1} parent=15 // pred_check_branch
          %226 = sbr.rel (%p224) target = $region32
        $region31: #{tpu_custom_call.1} parent=15 // pred_region
          %s227 = sand.u32 %s108, 1
          %s228 = scalar_lea.sflag [#allocation10], %s227
          %s229 = sand.u32 %s108, 1
          %s230 = smul.addr %s229, 16
          %s231 = scalar_lea.vmem [#allocation9], %s230
          %s233 = ssub.s32 256, 256
          %234 = vsyncadd %s228, %s233
          %s235 = smul.addr %s20, 128
          %s236 = scalar_lea.hbm %s3, %s235
          %s237 = sshll.u32 %s231, 4
          %s238 = int_to_ptr.vmem [resolvable:$true] %s237
          %243 = dma.hbm_to_vmem [thread:$0]  %s236, 256, %s238, %s228, 256, 128, 8
        $region32: #{tpu_custom_call.1} parent=15 // pred_fallthru
          _
      $region16: #{tpu_custom_call.1} parent=5 // pred_fallthru
        _
      %p244 = scmp.le.s32.totalorder 1, %s20
      %p245 = scmp.lt.s32.totalorder %s20, 3
      %p246 = pnand %p244, %p245
      %p247 = pneg %p246
      // Predicated region
      $region33: #{tpu_custom_call.1} parent=5 // pred_check
        _
      $region34: #{tpu_custom_call.1} parent=5 // pred_check_branch
        %249 = sbr.rel (%p246) target = $region36
      $region35: #{tpu_custom_call.1} parent=5 // pred_region
        %s250 = ssub.s32 %s20, 1
        %s251 = sand.u32 %s33, 1
        %s252 = scalar_lea.sflag [#allocation4], %s251
        %s253 = sand.u32 %s33, 1
        %s254 = smul.addr %s253, 16
        %s255 = scalar_lea.vmem [#allocation3], %s254
        // Predicated region
        $region37: #{tpu_custom_call.1} parent=35 // pred_check
          %p256 = pneg %p46
        $region38: #{tpu_custom_call.1} parent=35 // pred_check_branch
          %258 = sbr.rel (%p256) target = $region40
        $region39: #{tpu_custom_call.1} parent=35 // pred_region
          %259 = dma.done %s252, 256
        $region40: #{tpu_custom_call.1} parent=35 // pred_fallthru
          _
        %s260 = sand.u32 %s25, 1
        %s261 = scalar_lea.sflag [#allocation7], %s260
        %s262 = sand.u32 %s59, 1
        %s263 = smul.addr %s262, 16
        %s264 = scalar_lea.vmem [#allocation6], %s263
        // Predicated region
        $region41: #{tpu_custom_call.1} parent=35 // pred_check
          %p265 = pneg %p72
        $region42: #{tpu_custom_call.1} parent=35 // pred_check_branch
          %267 = sbr.rel (%p265) target = $region44
        $region43: #{tpu_custom_call.1} parent=35 // pred_region
          %268 = dma.done %s261, 256
        $region44: #{tpu_custom_call.1} parent=35 // pred_fallthru
          _
        %s269 = sand.u32 %s25, 1
        %s270 = scalar_lea.sflag [#allocation7], %s269
        %s271 = sand.u32 %s85, 1
        %s272 = smul.addr %s271, 16
        %s273 = scalar_lea.vmem [#allocation8], %s272
        // Predicated region
        $region45: #{tpu_custom_call.1} parent=35 // pred_check
          %p274 = pneg %p98
        $region46: #{tpu_custom_call.1} parent=35 // pred_check_branch
          %276 = sbr.rel (%p274) target = $region48
        $region47: #{tpu_custom_call.1} parent=35 // pred_region
          %277 = dma.done %s270, 256
        $region48: #{tpu_custom_call.1} parent=35 // pred_fallthru
          _
        %s278 = sand.u32 %s111, 1
        %s279 = scalar_lea.sflag [#allocation10], %s278
        %s280 = sand.u32 %s111, 1
        %s281 = smul.addr %s280, 16
        %s282 = scalar_lea.vmem [#allocation9], %s281
        // Predicated region
        $region49: #{tpu_custom_call.1} parent=35 // pred_check
          %p283 = pneg %p124
        $region50: #{tpu_custom_call.1} parent=35 // pred_check_branch
          %285 = sbr.rel (%p283) target = $region52
        $region51: #{tpu_custom_call.1} parent=35 // pred_region
          %286 = dma.done %s279, 256
        $region52: #{tpu_custom_call.1} parent=35 // pred_fallthru
          _
        %s287 = sand.u32 %s33, 1
        %s288 = scalar_lea.sflag [#allocation4], %s287
        %s289 = sand.u32 %s33, 1
        %s290 = smul.addr %s289, 16
        %s291 = scalar_lea.vmem [#allocation3], %s290
        %p292 = pneg %p46
        %p293 = pneg %p43
        %s294 = sand.u32 %s25, 1
        %s295 = scalar_lea.sflag [#allocation7], %s294
        %s296 = sand.u32 %s59, 1
        %s297 = smul.addr %s296, 16
        %s298 = scalar_lea.vmem [#allocation6], %s297
        %p299 = pneg %p72
        %p300 = pneg %p69
        %s301 = sand.u32 %s25, 1
        %s302 = scalar_lea.sflag [#allocation7], %s301
        %s303 = sand.u32 %s85, 1
        %s304 = smul.addr %s303, 16
        %s305 = scalar_lea.vmem [#allocation8], %s304
        %p306 = pneg %p98
        %p307 = pneg %p95
        %s308 = sand.u32 %s111, 1
        %s309 = scalar_lea.sflag [#allocation10], %s308
        %s310 = sand.u32 %s111, 1
        %s311 = smul.addr %s310, 16
        %s312 = scalar_lea.vmem [#allocation9], %s311
        %p313 = pneg %p124
        %p314 = pneg %p121
        %p315 = pneg %p145
        %p316 = pneg %p142
        %s317 = smul.u32 %s25, 10
        %p318 = scmp.eq.s32.totalorder %s25, 0
        // Predicated region
        $region53: #{tpu_custom_call.1} parent=35 // pred_check
          %p319 = pneg %p318
        $region54: #{tpu_custom_call.1} parent=35 // pred_check_branch
          %321 = sbr.rel (%p319) target = $region56
        $region55: #{tpu_custom_call.1} parent=35 // pred_region
          %vm322 = vcmask 123904
          %323 = vst.msk [vmem:[#allocation2] sm:$0x3] %vm322, 0.0
          %324 = vst.msk [vmem:[#allocation2 + $0x2] sm:$0x3] %vm322, 0.0
          %325 = vst.msk [vmem:[#allocation2 + $0x4] sm:$0x3] %vm322, 0.0
          %326 = vst.msk [vmem:[#allocation2 + $0x6] sm:$0x3] %vm322, 0.0
        $region56: #{tpu_custom_call.1} parent=35 // pred_fallthru
          _
        %v327 = vld [vmem:[%s255] sm:$0xff]
        %v328 = vld [vmem:[%s255 + $0x8] sm:$0xff]
        %vm329 = vcmp.gt.f32.partialorder %v327, 0.0
        %vm330 = vcmp.gt.f32.partialorder %v328, 0.0
        %v331 = vsel %vm329, 1, 0
        %v332 = vsel %vm330, 1, 0
        %v333 = vcvt.s32.f32 %v331
        %v334 = vcvt.s32.f32 %v332
        %vm335 = vcmask 130048
        %v336 = vsel %vm335, %v333, 0.0
        %v337 = vsel %vm335, %v334, 0.0
        %v338 = vadd.f32 %v336, %v337
        %339 = vadd.xlane.f32.xlu0 %v338
        %v340 = vpop.xlane.xlu0 %339
        %v341 = vrot.slane %v340, 4
        %v342 = vadd.f32 %v340, %v341
        %v343 = vrot.slane %v342, 2
        %v344 = vadd.f32 %v342, %v343
        %v345 = vrot.slane %v344, 1
        %v346 = vadd.f32 %v344, %v345
        %s347 = vtos %v346
        %s348 = scalar_lea.smem [#allocation11], %s317
        %349 = sst [smem:[%s348]] %s347
        %352 = vrot.lane.b32.xlu0 %v333, 1
        %v353 = vpop.permute.xlu0 %352
        %354 = vrot.lane.b32.xlu0 %v334, 1
        %v355 = vpop.permute.xlu0 %354
        %v358 = vmul.f32 %v333, %v353
        %v359 = vmul.f32 %v334, %v355
        %v360 = vsub.f32 1.0, %v358
        %v361 = vsub.f32 1.0, %v359
        %v362 = vrot.slane %v333, 7
        %v363 = vrot.slane %v334, 7
        %v366 = vmul.f32 %v333, %v362
        %v367 = vmul.f32 %v334, %v363
        %v368 = vsub.f32 1.0, %v366
        %v369 = vsub.f32 1.0, %v367
        %s370 = scalar_lea.vmem [#allocation2], 6
        %v371 = vld [vmem:[%s370] sm:$0x3]
        %v373 = vrot.slane %v371, 1
        %v376 = vmul.f32 %v333, %v371
        %v377 = vmul.f32 %v334, %v373
        %v378 = vsub.f32 1.0, %v376
        %v379 = vsub.f32 1.0, %v377
        %p380 = scmp.gt.s32.totalorder %s25, 0
        %s381 = scalar_select %p380, 1, 0
        %s382 = scvt.s32.f32 %s381
        %v383 = vld [vmem:[%s264] sm:$0xff]
        %v384 = vld [vmem:[%s264 + $0x8] sm:$0xff]
        %v385 = vsub.f32 %v327, %v383
        %v386 = vsub.f32 %v328, %v384
        %v387 = vand.u32 2147483647, %v385
        %v388 = vand.u32 2147483647, %v386
        %v389 = vmul.f32 %v387, %v333
        %v390 = vmul.f32 %v388, %v334
        %v391 = vsel %vm335, %v389, 0.0
        %v392 = vsel %vm335, %v390, 0.0
        %v393 = vadd.f32 %v391, %v392
        %394 = vadd.xlane.f32.xlu0 %v393
        %v395 = vpop.xlane.xlu0 %394
        %v396 = vrot.slane %v395, 4
        %v397 = vadd.f32 %v395, %v396
        %v398 = vrot.slane %v397, 2
        %v399 = vadd.f32 %v397, %v398
        %v400 = vrot.slane %v399, 1
        %v401 = vadd.f32 %v399, %v400
        %s402 = vtos %v401
        %s403 = sadd.s32 %s317, 1
        %s404 = scalar_lea.smem [#allocation11], %s403
        %405 = sst [smem:[%s404]] %s402
        %408 = vrot.lane.b32.xlu0 %v383, 1
        %v409 = vpop.permute.xlu0 %408
        %410 = vrot.lane.b32.xlu0 %v384, 1
        %v411 = vpop.permute.xlu0 %410
        %v414 = vsub.f32 %v383, %v409
        %v415 = vsub.f32 %v384, %v411
        %v416 = vand.u32 2147483647, %v414
        %v417 = vand.u32 2147483647, %v415
        %v418 = vmul.f32 %v360, %v416
        %v419 = vmul.f32 %v361, %v417
        %422 = vrot.lane.b32.xlu0 %v418, 127
        %v423 = vpop.permute.xlu0 %422
        %424 = vrot.lane.b32.xlu0 %v419, 127
        %v425 = vpop.permute.xlu0 %424
        %vm428 = vcmask 121856
        %v429 = vsel %vm428, %v423, 0.0
        %v430 = vsel %vm428, %v425, 0.0
        %v431 = vadd.f32 %v429, %v430
        %432 = vadd.xlane.f32.xlu0 %v431
        %v433 = vpop.xlane.xlu0 %432
        %v434 = vrot.slane %v433, 4
        %v435 = vadd.f32 %v433, %v434
        %v436 = vrot.slane %v435, 2
        %v437 = vadd.f32 %v435, %v436
        %v438 = vrot.slane %v437, 1
        %v439 = vadd.f32 %v437, %v438
        %s440 = vtos %v439
        %s441 = sadd.s32 %s317, 2
        %s442 = scalar_lea.smem [#allocation11], %s441
        %443 = sst [smem:[%s442]] %s440
        %v444 = vrot.slane %v383, 7
        %v445 = vrot.slane %v384, 7
        %v448 = vsub.f32 %v383, %v444
        %v449 = vsub.f32 %v384, %v445
        %v450 = vand.u32 2147483647, %v448
        %v451 = vand.u32 2147483647, %v449
        %v452 = vmul.f32 %v368, %v450
        %v453 = vmul.f32 %v369, %v451
        %v456 = vrot.slane %v452, 1
        %v457 = vrot.slane %v453, 1
        %vm460 = vcmask 129024
        %v461 = vsel %vm460, %v456, 0.0
        %v462 = vsel %vm460, %v457, 0.0
        %v463 = vadd.f32 %v461, %v462
        %464 = vadd.xlane.f32.xlu0 %v463
        %v465 = vpop.xlane.xlu0 %464
        %v466 = vrot.slane %v465, 4
        %v467 = vadd.f32 %v465, %v466
        %v468 = vrot.slane %v467, 2
        %v469 = vadd.f32 %v467, %v468
        %v470 = vrot.slane %v469, 1
        %v471 = vadd.f32 %v469, %v470
        %s472 = vtos %v471
        %v473 = vld [vmem:[#allocation2] sm:$0x3]
        %v475 = vrot.slane %v473, 1
        %v478 = vsub.f32 %v383, %v473
        %v479 = vsub.f32 %v384, %v475
        %v480 = vand.u32 2147483647, %v478
        %v481 = vand.u32 2147483647, %v479
        %v482 = vmul.f32 %v378, %v480
        %v483 = vmul.f32 %v379, %v481
        %v486 = vrot.slane %v483, 7
        %vm487 = vcmask 1041409
        %v488 = vsel %vm487, %v486, %v482
        %vm490 = vcmask 123904
        %v491 = vsel %vm490, %v488, 0.0
        %492 = vadd.xlane.f32.xlu0 %v491
        %v493 = vpop.xlane.xlu0 %492
        %v494 = vrot.slane %v493, 4
        %v495 = vadd.f32 %v493, %v494
        %v496 = vrot.slane %v495, 2
        %v497 = vadd.f32 %v495, %v496
        %v498 = vrot.slane %v497, 1
        %v499 = vadd.f32 %v497, %v498
        %s500 = vtos %v499
        %s501 = smul.f32 %s382, %s500
        %s502 = sadd.f32 %s472, %s501
        %vm504 = vcmask 130055
        %505 = vst.msk [vmem:[#allocation2 - $0x7] sm:$0x80] %vm504, %v383
        %vm506 = vcmask 122880
        %507 = vst.msk [vmem:[#allocation2 + $0x1] sm:$0x1] %vm506, %v445
        %s508 = sadd.s32 %s317, 3
        %s509 = scalar_lea.smem [#allocation11], %s508
        %510 = sst [smem:[%s509]] %s502
        %v511 = vld [vmem:[%s273] sm:$0xff]
        %v512 = vld [vmem:[%s273 + $0x8] sm:$0xff]
        %v513 = vsub.f32 %v327, %v511
        %v514 = vsub.f32 %v328, %v512
        %v515 = vand.u32 2147483647, %v513
        %v516 = vand.u32 2147483647, %v514
        %v517 = vmul.f32 %v515, %v333
        %v518 = vmul.f32 %v516, %v334
        %v519 = vsel %vm335, %v517, 0.0
        %v520 = vsel %vm335, %v518, 0.0
        %v521 = vadd.f32 %v519, %v520
        %522 = vadd.xlane.f32.xlu0 %v521
        %v523 = vpop.xlane.xlu0 %522
        %v524 = vrot.slane %v523, 4
        %v525 = vadd.f32 %v523, %v524
        %v526 = vrot.slane %v525, 2
        %v527 = vadd.f32 %v525, %v526
        %v528 = vrot.slane %v527, 1
        %v529 = vadd.f32 %v527, %v528
        %s530 = vtos %v529
        %s531 = sadd.s32 %s317, 4
        %s532 = scalar_lea.smem [#allocation11], %s531
        %533 = sst [smem:[%s532]] %s530
        %536 = vrot.lane.b32.xlu0 %v511, 1
        %v537 = vpop.permute.xlu0 %536
        %538 = vrot.lane.b32.xlu0 %v512, 1
        %v539 = vpop.permute.xlu0 %538
        %v542 = vsub.f32 %v511, %v537
        %v543 = vsub.f32 %v512, %v539
        %v544 = vand.u32 2147483647, %v542
        %v545 = vand.u32 2147483647, %v543
        %v546 = vmul.f32 %v360, %v544
        %v547 = vmul.f32 %v361, %v545
        %550 = vrot.lane.b32.xlu0 %v546, 127
        %v551 = vpop.permute.xlu0 %550
        %552 = vrot.lane.b32.xlu0 %v547, 127
        %v553 = vpop.permute.xlu0 %552
        %v556 = vsel %vm428, %v551, 0.0
        %v557 = vsel %vm428, %v553, 0.0
        %v558 = vadd.f32 %v556, %v557
        %559 = vadd.xlane.f32.xlu0 %v558
        %v560 = vpop.xlane.xlu0 %559
        %v561 = vrot.slane %v560, 4
        %v562 = vadd.f32 %v560, %v561
        %v563 = vrot.slane %v562, 2
        %v564 = vadd.f32 %v562, %v563
        %v565 = vrot.slane %v564, 1
        %v566 = vadd.f32 %v564, %v565
        %s567 = vtos %v566
        %s568 = sadd.s32 %s317, 5
        %s569 = scalar_lea.smem [#allocation11], %s568
        %570 = sst [smem:[%s569]] %s567
        %v571 = vrot.slane %v511, 7
        %v572 = vrot.slane %v512, 7
        %v575 = vsub.f32 %v511, %v571
        %v576 = vsub.f32 %v512, %v572
        %v577 = vand.u32 2147483647, %v575
        %v578 = vand.u32 2147483647, %v576
        %v579 = vmul.f32 %v368, %v577
        %v580 = vmul.f32 %v369, %v578
        %v583 = vrot.slane %v579, 1
        %v584 = vrot.slane %v580, 1
        %v587 = vsel %vm460, %v583, 0.0
        %v588 = vsel %vm460, %v584, 0.0
        %v589 = vadd.f32 %v587, %v588
        %590 = vadd.xlane.f32.xlu0 %v589
        %v591 = vpop.xlane.xlu0 %590
        %v592 = vrot.slane %v591, 4
        %v593 = vadd.f32 %v591, %v592
        %v594 = vrot.slane %v593, 2
        %v595 = vadd.f32 %v593, %v594
        %v596 = vrot.slane %v595, 1
        %v597 = vadd.f32 %v595, %v596
        %s598 = vtos %v597
        %s599 = scalar_lea.vmem [#allocation2], 2
        %v600 = vld [vmem:[%s599] sm:$0x3]
        %v602 = vrot.slane %v600, 1
        %v605 = vsub.f32 %v511, %v600
        %v606 = vsub.f32 %v512, %v602
        %v607 = vand.u32 2147483647, %v605
        %v608 = vand.u32 2147483647, %v606
        %v609 = vmul.f32 %v378, %v607
        %v610 = vmul.f32 %v379, %v608
        %v613 = vrot.slane %v610, 7
        %v614 = vsel %vm487, %v613, %v609
        %v616 = vsel %vm490, %v614, 0.0
        %617 = vadd.xlane.f32.xlu0 %v616
        %v618 = vpop.xlane.xlu0 %617
        %v619 = vrot.slane %v618, 4
        %v620 = vadd.f32 %v618, %v619
        %v621 = vrot.slane %v620, 2
        %v622 = vadd.f32 %v620, %v621
        %v623 = vrot.slane %v622, 1
        %v624 = vadd.f32 %v622, %v623
        %s625 = vtos %v624
        %s626 = smul.f32 %s382, %s625
        %s627 = sadd.f32 %s598, %s626
        %629 = vst.msk [vmem:[%s599 - $0x7] sm:$0x80] %vm504, %v511
        %630 = vst.msk [vmem:[%s599 + $0x1] sm:$0x1] %vm506, %v572
        %s631 = sadd.s32 %s317, 6
        %s632 = scalar_lea.smem [#allocation11], %s631
        %633 = sst [smem:[%s632]] %s627
        %v634 = vld [vmem:[%s282] sm:$0xff]
        %v635 = vld [vmem:[%s282 + $0x8] sm:$0xff]
        %v636 = vsub.f32 %v327, %v634
        %v637 = vsub.f32 %v328, %v635
        %v638 = vand.u32 2147483647, %v636
        %v639 = vand.u32 2147483647, %v637
        %v640 = vmul.f32 %v638, %v333
        %v641 = vmul.f32 %v639, %v334
        %v642 = vsel %vm335, %v640, 0.0
        %v643 = vsel %vm335, %v641, 0.0
        %v644 = vadd.f32 %v642, %v643
        %645 = vadd.xlane.f32.xlu0 %v644
        %v646 = vpop.xlane.xlu0 %645
        %v647 = vrot.slane %v646, 4
        %v648 = vadd.f32 %v646, %v647
        %v649 = vrot.slane %v648, 2
        %v650 = vadd.f32 %v648, %v649
        %v651 = vrot.slane %v650, 1
        %v652 = vadd.f32 %v650, %v651
        %s653 = vtos %v652
        %s654 = sadd.s32 %s317, 7
        %s655 = scalar_lea.smem [#allocation11], %s654
        %656 = sst [smem:[%s655]] %s653
        %659 = vrot.lane.b32.xlu0 %v634, 1
        %v660 = vpop.permute.xlu0 %659
        %661 = vrot.lane.b32.xlu0 %v635, 1
        %v662 = vpop.permute.xlu0 %661
        %v665 = vsub.f32 %v634, %v660
        %v666 = vsub.f32 %v635, %v662
        %v667 = vand.u32 2147483647, %v665
        %v668 = vand.u32 2147483647, %v666
        %v669 = vmul.f32 %v360, %v667
        %v670 = vmul.f32 %v361, %v668
        %673 = vrot.lane.b32.xlu0 %v669, 127
        %v674 = vpop.permute.xlu0 %673
        %675 = vrot.lane.b32.xlu0 %v670, 127
        %v676 = vpop.permute.xlu0 %675
        %v679 = vsel %vm428, %v674, 0.0
        %v680 = vsel %vm428, %v676, 0.0
        %v681 = vadd.f32 %v679, %v680
        %682 = vadd.xlane.f32.xlu0 %v681
        %v683 = vpop.xlane.xlu0 %682
        %v684 = vrot.slane %v683, 4
        %v685 = vadd.f32 %v683, %v684
        %v686 = vrot.slane %v685, 2
        %v687 = vadd.f32 %v685, %v686
        %v688 = vrot.slane %v687, 1
        %v689 = vadd.f32 %v687, %v688
        %s690 = vtos %v689
        %s691 = sadd.s32 %s317, 8
        %s692 = scalar_lea.smem [#allocation11], %s691
        %693 = sst [smem:[%s692]] %s690
        %v694 = vrot.slane %v634, 7
        %v695 = vrot.slane %v635, 7
        %v698 = vsub.f32 %v634, %v694
        %v699 = vsub.f32 %v635, %v695
        %v700 = vand.u32 2147483647, %v698
        %v701 = vand.u32 2147483647, %v699
        %v702 = vmul.f32 %v368, %v700
        %v703 = vmul.f32 %v369, %v701
        %v706 = vrot.slane %v702, 1
        %v707 = vrot.slane %v703, 1
        %v710 = vsel %vm460, %v706, 0.0
        %v711 = vsel %vm460, %v707, 0.0
        %v712 = vadd.f32 %v710, %v711
        %713 = vadd.xlane.f32.xlu0 %v712
        %v714 = vpop.xlane.xlu0 %713
        %v715 = vrot.slane %v714, 4
        %v716 = vadd.f32 %v714, %v715
        %v717 = vrot.slane %v716, 2
        %v718 = vadd.f32 %v716, %v717
        %v719 = vrot.slane %v718, 1
        %v720 = vadd.f32 %v718, %v719
        %s721 = vtos %v720
        %s722 = scalar_lea.vmem [#allocation2], 4
        %v723 = vld [vmem:[%s722] sm:$0x3]
        %v725 = vrot.slane %v723, 1
        %v728 = vsub.f32 %v634, %v723
        %v729 = vsub.f32 %v635, %v725
        %v730 = vand.u32 2147483647, %v728
        %v731 = vand.u32 2147483647, %v729
        %v732 = vmul.f32 %v378, %v730
        %v733 = vmul.f32 %v379, %v731
        %v736 = vrot.slane %v733, 7
        %v737 = vsel %vm487, %v736, %v732
        %v739 = vsel %vm490, %v737, 0.0
        %740 = vadd.xlane.f32.xlu0 %v739
        %v741 = vpop.xlane.xlu0 %740
        %v742 = vrot.slane %v741, 4
        %v743 = vadd.f32 %v741, %v742
        %v744 = vrot.slane %v743, 2
        %v745 = vadd.f32 %v743, %v744
        %v746 = vrot.slane %v745, 1
        %v747 = vadd.f32 %v745, %v746
        %s748 = vtos %v747
        %s749 = smul.f32 %s382, %s748
        %s750 = sadd.f32 %s721, %s749
        %752 = vst.msk [vmem:[%s722 - $0x7] sm:$0x80] %vm504, %v634
        %753 = vst.msk [vmem:[%s722 + $0x1] sm:$0x1] %vm506, %v695
        %s754 = sadd.s32 %s317, 9
        %s755 = scalar_lea.smem [#allocation11], %s754
        %756 = sst [smem:[%s755]] %s750
        %758 = vst.msk [vmem:[%s370 - $0x7] sm:$0x80] %vm504, %v333
        %759 = vst.msk [vmem:[%s370 + $0x1] sm:$0x1] %vm506, %v363
        // Predicated region
        $region57: #{tpu_custom_call.1} parent=35 // pred_check
          %p760 = pneg %p142
        $region58: #{tpu_custom_call.1} parent=35 // pred_check_branch
          %762 = sbr.rel (%p760) target = $region60
        $region59: #{tpu_custom_call.1} parent=35 // pred_region
          %s764 = ssub.s32 16, 16
          %765 = vsyncadd [#allocation5], %s764
          %768 = dma.smem_to_hbm [#allocation11], 16, %s4, [#allocation5]
        $region60: #{tpu_custom_call.1} parent=35 // pred_fallthru
          _
        // Predicated region
        $region61: #{tpu_custom_call.1} parent=35 // pred_check
          %p769 = pneg %p142
        $region62: #{tpu_custom_call.1} parent=35 // pred_check_branch
          %771 = sbr.rel (%p769) target = $region64
        $region63: #{tpu_custom_call.1} parent=35 // pred_region
          %772 = dma.done [#allocation5], 16
        $region64: #{tpu_custom_call.1} parent=35 // pred_fallthru
          _
        %773 = sfence
      $region36: #{tpu_custom_call.1} parent=5 // pred_fallthru
        _
      %p774 = scmp.le.s32.totalorder 2, %s20
      // Predicated region
      $region65: #{tpu_custom_call.1} parent=5 // pred_check
        %p775 = pneg %p774
      $region66: #{tpu_custom_call.1} parent=5 // pred_check_branch
        %777 = sbr.rel (%p775) target = $region68
      $region67: #{tpu_custom_call.1} parent=5 // pred_region
        %s778 = ssub.s32 %s20, 2
      $region68: #{tpu_custom_call.1} parent=5 // pred_fallthru
        _
    $region6: #{tpu_custom_call.1} parent=1 // loop_footer
      %s24 = sadd.s32 1, %s20
    $region7: #{tpu_custom_call.1} parent=1 // loop_footer_branch
      %19 = sbr.rel target = $region3
    $region8: #{tpu_custom_call.1} parent=1 // loop_exit
      _
    %779 = vsyncpa [#allocation4], 1
    %s780 = scalar_lea.sflag [#allocation4], 1
    %781 = vsyncpa %s780, 1
    %782 = vsyncpa [#allocation7], 1
    %s783 = scalar_lea.sflag [#allocation7], 1
    %784 = vsyncpa %s783, 1
    %785 = vsyncpa [#allocation10], 1
    %s786 = scalar_lea.sflag [#allocation10], 1
    %787 = vsyncpa %s786, 1
    %788 = vsyncpa [#allocation5], 1
    %s789 = scalar_lea.sflag [#allocation5], 1
    %790 = vsyncpa %s789, 1

</llo_original>
